<compile_context>
chip_gen: v6e
topology: v6e:2x2x1
jax: 0.10.0
libtpu: 0.0.40
codegen_flags: <defaults>
</compile_context>

<pallas_src>
import jax
import jax.numpy as jnp
from jax.experimental import pallas as pl
from jax.experimental.pallas import tpu as pltpu


def decoder_kernel(xT_ref, w3_ref, b3_ref, w4_ref, b4_ref, outT_ref):
    # xT:   (E1, TB)    w3: (E0, E1)   b3: (E0, 1)
    # h1T:  (E0, TB)    w4: (F,  E0)   b4: (F, 1)
    # outT: (F,  TB)
    h1 = jnp.dot(w3_ref[...], xT_ref[...], preferred_element_type=jnp.float32)
    h1 = jnp.tanh(h1 + b3_ref[...])
    h2 = jnp.dot(w4_ref[...], h1, preferred_element_type=jnp.float32)
    h2 = jnp.tanh(h2 + b4_ref[...])
    outT_ref[...] = h2.astype(outT_ref.dtype)


def decoder_forward(x, w3, b3, w4, b4, *, batch_tile=512):
    """Fused Decoder forward.

    x:  (B, E1) activations
    w3: (E0, E1), b3: (E0,)   -- torch nn.Linear layout (out, in)
    w4: (F,  E0), b4: (F,)
    returns (B, F)
    """
    B, E1 = x.shape
    E0 = w3.shape[0]
    F = w4.shape[0]

    w3 = w3.astype(jnp.float32)
    w4 = w4.astype(jnp.float32)
    b3 = b3.reshape(E0, 1).astype(jnp.float32)   # 2-D -> clean lane-broadcast add
    b4 = b4.reshape(F, 1).astype(jnp.float32)
    xT = x.astype(jnp.float32).T                 # (E1, B): batch on lanes

    if B <= batch_tile:
        # Tiny-batch path: no grid, everything VMEM-resident, zero pipeline
        # bookkeeping.
        outT = pl.pallas_call(
            decoder_kernel,
            out_shape=jax.ShapeDtypeStruct((F, B), jnp.float32),
            in_specs=[pl.BlockSpec(memory_space=pltpu.MemorySpace.VMEM)] * 5,
            out_specs=pl.BlockSpec(memory_space=pltpu.MemorySpace.VMEM),
        )(xT, w3, b3, w4, b4)
        return outT.T

    # Batched path: grid over lane-dense batch tiles, weights held resident.
    TB = batch_tile                      # multiple of 128 -> dense lane stores
    n_tiles = pl.cdiv(B, TB)
    B_pad = n_tiles * TB
    if B_pad != B:
        xT = jnp.pad(xT, ((0, 0), (0, B_pad - B)))

    outT = pl.pallas_call(
        decoder_kernel,
        out_shape=jax.ShapeDtypeStruct((F, B_pad), jnp.float32),
        grid=(n_tiles,),
        in_specs=[
            pl.BlockSpec((E1, TB), lambda i: (0, i)),   # x tile (streams)
            pl.BlockSpec((E0, E1), lambda i: (0, 0)),   # w3 (resident)
            pl.BlockSpec((E0, 1), lambda i: (0, 0)),    # b3 (resident)
            pl.BlockSpec((F, E0), lambda i: (0, 0)),    # w4 (resident)
            pl.BlockSpec((F, 1), lambda i: (0, 0)),     # b4 (resident)
        ],
        out_specs=pl.BlockSpec((F, TB), lambda i: (0, i)),
        compiler_params=pltpu.CompilerParams(
            dimension_semantics=("parallel",)),         # shards across v7x's 2 TCs
    )(xT, w3, b3, w4, b4)
    return outT[:, :B].T


def decoder_ref(x, w3, b3, w4, b4):
    h = jnp.tanh(x @ w3.T + b3)
    return jnp.tanh(h @ w4.T + b4)


def init_linear_params(key, fan_in, fan_out):
    """torch.nn.Linear-style init: W (out, in), b (out,), U(-1/sqrt(fan_in), +1/sqrt(fan_in))."""
    kw, kb = jax.random.split(key)
    bound = 1.0 / (fan_in ** 0.5)
    w = jax.random.uniform(kw, (fan_out, fan_in), jnp.float32, -bound, bound)
    b = jax.random.uniform(kb, (fan_out,), jnp.float32, -bound, bound)
    return w, b


if __name__ == "__main__":
    # Shapes implied by the module: encoding_dim=(16, 8), input_features=32.
    # Decoder maps (B, 8) -> (B, 16) -> (B, 32).
    input_features = 32
    encoding_dim = (16, 8)

    root = jax.random.PRNGKey(0)
    k3, k4, kx_small, kx_big = jax.random.split(root, 4)

    w3, b3 = init_linear_params(k3, encoding_dim[1], encoding_dim[0])   # fc3
    w4, b4 = init_linear_params(k4, encoding_dim[0], input_features)    # fc4

    # (a) tiny batch -> grid-free, fully VMEM-resident path.
    x_small = jax.random.normal(kx_small, (8, encoding_dim[1]), jnp.float32)
    out_small = jax.block_until_ready(decoder_forward(x_small, w3, b3, w4, b4))
    ref_small = decoder_ref(x_small, w3, b3, w4, b4)
    assert out_small.shape == (8, input_features)
    assert jnp.allclose(out_small, ref_small, atol=2e-5, rtol=2e-5)

    # (b) batched path -> grid over lane-dense batch tiles (non-divisible batch
    #     exercises the pad+slice handling), weights stay resident.
    x_big = jax.random.normal(kx_big, (300, encoding_dim[1]), jnp.float32)
    out_big = jax.block_until_ready(
        decoder_forward(x_big, w3, b3, w4, b4, batch_tile=128))
    ref_big = decoder_ref(x_big, w3, b3, w4, b4)
    assert out_big.shape == (300, input_features)
    assert jnp.allclose(out_big, ref_big, atol=2e-5, rtol=2e-5)

    print("KERNEL_OK")
</pallas_src>

<mosaic_0001>
module attributes {stable_mosaic.version = 11 : i64} {
  func.func @decoder_kernel(%arg0: memref<8x8xf32, #tpu.memory_space<vmem>>, %arg1: memref<16x8xf32, #tpu.memory_space<vmem>>, %arg2: memref<16x1xf32, #tpu.memory_space<vmem>>, %arg3: memref<32x16xf32, #tpu.memory_space<vmem>>, %arg4: memref<32x1xf32, #tpu.memory_space<vmem>>, %arg5: memref<32x8xf32, #tpu.memory_space<vmem>>) attributes {dimension_semantics = [], scalar_prefetch = 0 : i64, scratch_operands = 0 : i64, tpu.core_type = #tpu.core_type<tc>} {
    %c0 = arith.constant 0 : index
    %c0_0 = arith.constant 0 : index
    %0 = vector.load %arg1[%c0, %c0_0] : memref<16x8xf32, #tpu.memory_space<vmem>>, vector<16x8xf32>
    %c0_1 = arith.constant 0 : index
    %c0_2 = arith.constant 0 : index
    %1 = vector.load %arg0[%c0_1, %c0_2] : memref<8x8xf32, #tpu.memory_space<vmem>>, vector<8x8xf32>
    %cst = arith.constant dense<0.000000e+00> : vector<16x8xf32>
    %2 = tpu.matmul %0, %1, %cst {dimension_numbers = #tpu.dot_dimension_numbers<[1], [0], [0], [1], [0, 0, 1, 1], [], []>} : vector<16x8xf32>, vector<8x8xf32>, vector<16x8xf32> -> vector<16x8xf32>
    %c0_3 = arith.constant 0 : index
    %c0_4 = arith.constant 0 : index
    %3 = vector.load %arg2[%c0_3, %c0_4] : memref<16x1xf32, #tpu.memory_space<vmem>>, vector<16x1xf32>
    %4 = vector.broadcast %3 : vector<16x1xf32> to vector<16x8xf32>
    %5 = arith.addf %2, %4 : vector<16x8xf32>
    %6 = math.tanh %5 : vector<16x8xf32>
    %c0_5 = arith.constant 0 : index
    %c0_6 = arith.constant 0 : index
    %7 = vector.load %arg3[%c0_5, %c0_6] : memref<32x16xf32, #tpu.memory_space<vmem>>, vector<32x16xf32>
    %cst_7 = arith.constant dense<0.000000e+00> : vector<32x8xf32>
    %8 = tpu.matmul %7, %6, %cst_7 {dimension_numbers = #tpu.dot_dimension_numbers<[1], [0], [0], [1], [0, 0, 1, 1], [], []>} : vector<32x16xf32>, vector<16x8xf32>, vector<32x8xf32> -> vector<32x8xf32>
    %c0_8 = arith.constant 0 : index
    %c0_9 = arith.constant 0 : index
    %9 = vector.load %arg4[%c0_8, %c0_9] : memref<32x1xf32, #tpu.memory_space<vmem>>, vector<32x1xf32>
    %10 = vector.broadcast %9 : vector<32x1xf32> to vector<32x8xf32>
    %11 = arith.addf %8, %10 : vector<32x8xf32>
    %12 = math.tanh %11 : vector<32x8xf32>
    %c0_10 = arith.constant 0 : index
    %c0_11 = arith.constant 0 : index
    %13 = vector.load %arg5[%c0_10, %c0_11] : memref<32x8xf32, #tpu.memory_space<vmem>>, vector<32x8xf32>
    tpu.vector_store %arg5[%c0_10, %c0_11], %12 {strides = array<i32>} : memref<32x8xf32, #tpu.memory_space<vmem>>, vector<32x8xf32>,
    return
  }
}

</mosaic_0001>

<llo_original>
// kernel: tpu_custom_call.1
$region0: #{tpu_custom_call.1}
  #allocation0 [shape = 'u32[]', space=smem, size = 0x4, offset = 0x4, fixed_abs, tag = 'smem constant byte address 0x4 - core index']
  #allocation1 [shape = 'u32[144,128]{1,0:T(1,128)}', space=vmem, size = 0x12000, scoped, tag = 'internal scratch']
  %s0 = inlined_call_operand.vmem [shape: f32[8,8], index: 0, kind: input, shape index: {}]
  %s1 = inlined_call_operand.vmem [shape: f32[16,8], index: 1, kind: input, shape index: {}]
  %s2 = inlined_call_operand.vmem [shape: f32[16,1], index: 2, kind: input, shape index: {}]
  %s3 = inlined_call_operand.vmem [shape: f32[32,16], index: 3, kind: input, shape index: {}]
  %s4 = inlined_call_operand.vmem [shape: f32[32,1], index: 4, kind: input, shape index: {}]
  %s5 = inlined_call_operand.vmem [shape: f32[32,8], index: 5, kind: output, shape index: {}]
  %s6 = sld [smem:[#allocation0]]
  $region30: #{tpu_custom_call.1} parent=0
    _
  %s8 = ssub.s32 1, %s6
  %s9 = scalar_select 0, %s8, %s6
  // Predicated region
  $region2: #{tpu_custom_call.1} parent=0 // pred_check
    _
  $region3: #{tpu_custom_call.1} parent=0 // pred_check_branch
    %11 = sbr.rel (0) target = $region5
  $region4: #{tpu_custom_call.1} parent=0 // pred_region
    _
  $region5: #{tpu_custom_call.1} parent=0 // pred_fallthru
    _
  // Predicated region
  $region6: #{tpu_custom_call.1} parent=0 // pred_check
    _
  $region7: #{tpu_custom_call.1} parent=0 // pred_check_branch
    %13 = sbr.rel (0) target = $region9
  $region8: #{tpu_custom_call.1} parent=0 // pred_region
    _
  $region9: #{tpu_custom_call.1} parent=0 // pred_fallthru
    _
  // Predicated region
  $region10: #{tpu_custom_call.1} parent=0 // pred_check
    _
  $region11: #{tpu_custom_call.1} parent=0 // pred_check_branch
    %15 = sbr.rel (0) target = $region13
  $region12: #{tpu_custom_call.1} parent=0 // pred_region
    _
  $region13: #{tpu_custom_call.1} parent=0 // pred_fallthru
    _
  // Predicated region
  $region14: #{tpu_custom_call.1} parent=0 // pred_check
    _
  $region15: #{tpu_custom_call.1} parent=0 // pred_check_branch
    %17 = sbr.rel (0) target = $region17
  $region16: #{tpu_custom_call.1} parent=0 // pred_region
    _
  $region17: #{tpu_custom_call.1} parent=0 // pred_fallthru
    _
  // Predicated region
  $region18: #{tpu_custom_call.1} parent=0 // pred_check
    _
  $region19: #{tpu_custom_call.1} parent=0 // pred_check_branch
    %19 = sbr.rel (0) target = $region21
  $region20: #{tpu_custom_call.1} parent=0 // pred_region
    _
  $region21: #{tpu_custom_call.1} parent=0 // pred_fallthru
    _
  %v20 = vld [vmem:[%s1] sm:$0xff]
  %v21 = vld [vmem:[%s1 + $0x8] sm:$0xff]
  %v22 = vld [vmem:[%s0] sm:$0xff]
  %v23 = vld [vmem:[%s2] sm:$0xff]
  %v24 = vld [vmem:[%s2 + $0x8] sm:$0xff]
  %26 = vset.pattern.permute.xlu0 0
  %27 = vperm.xlu0 %26, %v23
  %v28 = vpop.permute.xlu0 %27
  %31 = vset.pattern.permute.xlu0 0
  %32 = vperm.xlu0 %31, %v24
  %v33 = vpop.permute.xlu0 %32
  %vm35 = vcmask 64512
  %v37 = vsel %vm35, %v20, 0
  %v40 = vsel %vm35, %v21, 0
  %42 = vmatprep.subr.mxu0 0.0
  %43 = vmatpush1.msra.mxu0 0.0
  %44 = vmatprep.subr.mxu0 0.0
  %45 = vmatpush1.msra.mxu0 0.0
  %46 = vmatprep.subr.mxu0 0.0
  %47 = vmatpush1.msra.mxu0 0.0
  %48 = vmatprep.subr.mxu0 0.0
  %49 = vmatpush1.msra.mxu0 0.0
  %50 = vmatprep.subr.mxu0 0.0
  %51 = vmatpush1.msra.mxu0 0.0
  %52 = vmatprep.subr.mxu0 0.0
  %53 = vmatpush1.msra.mxu0 0.0
  %54 = vmatprep.subr.mxu0 0.0
  %55 = vmatpush1.msra.mxu0 0.0
  %56 = vmatprep.subr.mxu0 0.0
  %57 = vmatpush1.msra.mxu0 0.0
  %58 = vmatprep.subr.mxu0 0.0
  %59 = vmatpush1.msra.mxu0 0.0
  %60 = vmatprep.subr.mxu0 0.0
  %61 = vmatpush1.msra.mxu0 0.0
  %62 = vmatprep.subr.mxu0 0.0
  %63 = vmatpush1.msra.mxu0 0.0
  %64 = vmatprep.subr.mxu0 0.0
  %65 = vmatpush1.msra.mxu0 0.0
  %66 = vmatprep.subr.mxu0 0.0
  %67 = vmatpush1.msra.mxu0 0.0
  %68 = vmatprep.subr.mxu0 0.0
  %69 = vmatpush1.msra.mxu0 0.0
  %70 = vmatprep.subr.mxu0 0.0
  %71 = vmatpush1.msra.mxu0 0.0
  %72 = vmatprep.subr.mxu0 0.0
  %73 = vmatpush1.msra.mxu0 %v22
  %74 = vmatprep.subr.mxu0 0.0
  %75 = vmatpush2.msra.mxu0 0.0
  %76 = vmatprep.subr.mxu0 0.0
  %77 = vmatpush2.msra.mxu0 0.0
  %78 = vmatprep.subr.mxu0 0.0
  %79 = vmatpush2.msra.mxu0 0.0
  %80 = vmatprep.subr.mxu0 0.0
  %81 = vmatpush2.msra.mxu0 0.0
  %82 = vmatprep.subr.mxu0 0.0
  %83 = vmatpush2.msra.mxu0 0.0
  %84 = vmatprep.subr.mxu0 0.0
  %85 = vmatpush2.msra.mxu0 0.0
  %86 = vmatprep.subr.mxu0 0.0
  %87 = vmatpush2.msra.mxu0 0.0
  %88 = vmatprep.subr.mxu0 0.0
  %89 = vmatpush2.msra.mxu0 0.0
  %90 = vmatprep.subr.mxu0 0.0
  %91 = vmatpush2.msra.mxu0 0.0
  %92 = vmatprep.subr.mxu0 0.0
  %93 = vmatpush2.msra.mxu0 0.0
  %94 = vmatprep.subr.mxu0 0.0
  %95 = vmatpush2.msra.mxu0 0.0
  %96 = vmatprep.subr.mxu0 0.0
  %97 = vmatpush2.msra.mxu0 0.0
  %98 = vmatprep.subr.mxu0 0.0
  %99 = vmatpush2.msra.mxu0 0.0
  %100 = vmatprep.subr.mxu0 0.0
  %101 = vmatpush2.msra.mxu0 0.0
  %102 = vmatprep.subr.mxu0 0.0
  %103 = vmatpush2.msra.mxu0 0.0
  %104 = vmatprep.subr.mxu0 0.0
  %105 = vmatpush2.msra.mxu0 0.0
  %106 = vmatprep.mubr.f32.mxu0 0.0
  %107 = vmatmul.mubr.f32.gmra.mxu0 %v37
  %v108 = vpop.f32.mrf.mxu0
  %v109 = vadd.f32 %v28, %v108
  %v110 = vpop.f32.mrf.mxu0
  %111 = vmatprep.mubr.f32.mxu0 0.0
  %112 = vmatmul.mubr.f32.gmra.mxu0 %v40
  %v113 = vpop.f32.mrf.mxu0
  %v114 = vadd.f32 %v33, %v113
  %v115 = vpop.f32.mrf.mxu0
  %116 = vdwg.mxu0
  %v117 = vtanh.pop %v109
  %v118 = vtanh.pop %v114
  %v119 = vld [vmem:[%s3] sm:$0xff]
  %v120 = vld [vmem:[%s3 + $0x8] sm:$0xff]
  %v121 = vld [vmem:[%s3 + $0x10] sm:$0xff]
  %v122 = vld [vmem:[%s3 + $0x18] sm:$0xff]
  %v123 = vld [vmem:[%s4] sm:$0xff]
  %v124 = vld [vmem:[%s4 + $0x8] sm:$0xff]
  %v125 = vld [vmem:[%s4 + $0x10] sm:$0xff]
  %v126 = vld [vmem:[%s4 + $0x18] sm:$0xff]
  %128 = vset.pattern.permute.xlu0 0
  %129 = vperm.xlu0 %128, %v123
  %v130 = vpop.permute.xlu0 %129
  %133 = vset.pattern.permute.xlu0 0
  %134 = vperm.xlu0 %133, %v124
  %v135 = vpop.permute.xlu0 %134
  %138 = vset.pattern.permute.xlu0 0
  %139 = vperm.xlu0 %138, %v125
  %v140 = vpop.permute.xlu0 %139
  %143 = vset.pattern.permute.xlu0 0
  %144 = vperm.xlu0 %143, %v126
  %v145 = vpop.permute.xlu0 %144
  %vm147 = vcmask 130048
  %v149 = vsel %vm147, %v119, 0
  %v152 = vsel %vm147, %v120, 0
  %v155 = vsel %vm147, %v121, 0
  %v158 = vsel %vm147, %v122, 0
  %160 = vmatprep.subr.mxu0 0.0
  %161 = vmatpush1.msra.mxu0 0.0
  %162 = vmatprep.subr.mxu0 0.0
  %163 = vmatpush1.msra.mxu0 0.0
  %164 = vmatprep.subr.mxu0 0.0
  %165 = vmatpush1.msra.mxu0 0.0
  %166 = vmatprep.subr.mxu0 0.0
  %167 = vmatpush1.msra.mxu0 0.0
  %168 = vmatprep.subr.mxu0 0.0
  %169 = vmatpush1.msra.mxu0 0.0
  %170 = vmatprep.subr.mxu0 0.0
  %171 = vmatpush1.msra.mxu0 0.0
  %172 = vmatprep.subr.mxu0 0.0
  %173 = vmatpush1.msra.mxu0 0.0
  %174 = vmatprep.subr.mxu0 0.0
  %175 = vmatpush1.msra.mxu0 0.0
  %176 = vmatprep.subr.mxu0 0.0
  %177 = vmatpush1.msra.mxu0 0.0
  %178 = vmatprep.subr.mxu0 0.0
  %179 = vmatpush1.msra.mxu0 0.0
  %180 = vmatprep.subr.mxu0 0.0
  %181 = vmatpush1.msra.mxu0 0.0
  %182 = vmatprep.subr.mxu0 0.0
  %183 = vmatpush1.msra.mxu0 0.0
  %184 = vmatprep.subr.mxu0 0.0
  %185 = vmatpush1.msra.mxu0 0.0
  %186 = vmatprep.subr.mxu0 0.0
  %187 = vmatpush1.msra.mxu0 0.0
  %188 = vmatprep.subr.mxu0 0.0
  %189 = vmatpush1.msra.mxu0 %v118
  %190 = vmatprep.subr.mxu0 0.0
  %191 = vmatpush1.msra.mxu0 %v117
  %192 = vmatprep.subr.mxu0 0.0
  %193 = vmatpush2.msra.mxu0 0.0
  %194 = vmatprep.subr.mxu0 0.0
  %195 = vmatpush2.msra.mxu0 0.0
  %196 = vmatprep.subr.mxu0 0.0
  %197 = vmatpush2.msra.mxu0 0.0
  %198 = vmatprep.subr.mxu0 0.0
  %199 = vmatpush2.msra.mxu0 0.0
  %200 = vmatprep.subr.mxu0 0.0
  %201 = vmatpush2.msra.mxu0 0.0
  %202 = vmatprep.subr.mxu0 0.0
  %203 = vmatpush2.msra.mxu0 0.0
  %204 = vmatprep.subr.mxu0 0.0
  %205 = vmatpush2.msra.mxu0 0.0
  %206 = vmatprep.subr.mxu0 0.0
  %207 = vmatpush2.msra.mxu0 0.0
  %208 = vmatprep.subr.mxu0 0.0
  %209 = vmatpush2.msra.mxu0 0.0
  %210 = vmatprep.subr.mxu0 0.0
  %211 = vmatpush2.msra.mxu0 0.0
  %212 = vmatprep.subr.mxu0 0.0
  %213 = vmatpush2.msra.mxu0 0.0
  %214 = vmatprep.subr.mxu0 0.0
  %215 = vmatpush2.msra.mxu0 0.0
  %216 = vmatprep.subr.mxu0 0.0
  %217 = vmatpush2.msra.mxu0 0.0
  %218 = vmatprep.subr.mxu0 0.0
  %219 = vmatpush2.msra.mxu0 0.0
  %220 = vmatprep.subr.mxu0 0.0
  %221 = vmatpush2.msra.mxu0 0.0
  %222 = vmatprep.subr.mxu0 0.0
  %223 = vmatpush2.msra.mxu0 0.0
  %224 = vmatprep.mubr.f32.mxu0 0.0
  %225 = vmatmul.mubr.f32.gmra.mxu0 %v149
  %v226 = vpop.f32.mrf.mxu0
  %v227 = vadd.f32 %v130, %v226
  %v228 = vpop.f32.mrf.mxu0
  %229 = vmatprep.mubr.f32.mxu0 0.0
  %230 = vmatmul.mubr.f32.gmra.mxu0 %v152
  %v231 = vpop.f32.mrf.mxu0
  %v232 = vadd.f32 %v135, %v231
  %v233 = vpop.f32.mrf.mxu0
  %234 = vmatprep.mubr.f32.mxu0 0.0
  %235 = vmatmul.mubr.f32.gmra.mxu0 %v155
  %v236 = vpop.f32.mrf.mxu0
  %v237 = vadd.f32 %v140, %v236
  %v238 = vpop.f32.mrf.mxu0
  %239 = vmatprep.mubr.f32.mxu0 0.0
  %240 = vmatmul.mubr.f32.gmra.mxu0 %v158
  %v241 = vpop.f32.mrf.mxu0
  %v242 = vadd.f32 %v145, %v241
  %v243 = vpop.f32.mrf.mxu0
  %244 = vdwg.mxu0
  %v245 = vtanh.pop %v227
  %v246 = vtanh.pop %v232
  %v247 = vtanh.pop %v237
  %v248 = vtanh.pop %v242
  %249 = vst.msk [vmem:[%s5] sm:$0xff] %vm35, %v245
  %250 = vst.msk [vmem:[%s5 + $0x8] sm:$0xff] %vm35, %v246
  %251 = vst.msk [vmem:[%s5 + $0x10] sm:$0xff] %vm35, %v247
  %252 = vst.msk [vmem:[%s5 + $0x18] sm:$0xff] %vm35, %v248
  // Predicated region
  $region22: #{tpu_custom_call.1} parent=0 // pred_check
    _
  $region23: #{tpu_custom_call.1} parent=0 // pred_check_branch
    %254 = sbr.rel (0) target = $region25
  $region24: #{tpu_custom_call.1} parent=0 // pred_region
    _
  $region25: #{tpu_custom_call.1} parent=0 // pred_fallthru
    _
  // Predicated region
  $region26: #{tpu_custom_call.1} parent=0 // pred_check
    _
  $region27: #{tpu_custom_call.1} parent=0 // pred_check_branch
    %256 = sbr.rel (0) target = $region29
  $region28: #{tpu_custom_call.1} parent=0 // pred_region
    _
  $region29: #{tpu_custom_call.1} parent=0 // pred_fallthru
    _

</llo_original>
